<compile_context>
chip_gen: v7x
topology: tpu7x:2x2x1
jax: 0.10.0
libtpu: 0.0.40
codegen_flags: <defaults>
</compile_context>

<pallas_src>
import functools

import jax
import jax.numpy as jnp
from jax.experimental import pallas as pl
from jax.experimental.pallas import tpu as pltpu

_LANES = 128


def _min_sublanes(dtype) -> int:
    """Minimum sublane count for a lane-dense tile of this dtype."""
    itemsize = jnp.dtype(dtype).itemsize
    if itemsize >= 4:
        return 8          # f32 / i32
    if itemsize == 2:
        return 16         # bf16 / f16
    return 32             # int8 / fp8


def _smooth_step_kernel(x_ref, o_ref, *, lower, upper, a3, a1, a0):
    x = x_ref[...]
    # Horner form: 3 mul + 2 add (vs 4 mul + 2 add).
    poly = (a3 * x * x + a1) * x + a0
    y = jnp.where(
        x <= lower,
        jnp.zeros_like(x),
        jnp.where(x >= upper, jnp.ones_like(x), poly),
    )
    o_ref[...] = y.astype(o_ref.dtype)


def smooth_step(x, gamma=1.0, *, tile_rows=1024):
    """Pallas TPU implementation of SmoothStep.forward.

    NOTE: `gamma` must be a static Python number (as in the PyTorch module,
    where it is a constructor constant). For a traced gamma, pass the
    coefficients via an SMEM scalar instead.
    """
    lower = -gamma / 2.0
    upper = gamma / 2.0
    a3 = -2.0 / gamma ** 3
    a1 = 3.0 / (2.0 * gamma)
    a0 = 0.5

    orig_shape = x.shape
    dtype = x.dtype
    n = x.size
    if n == 0:
        return x

    min_rows = _min_sublanes(dtype)
    min_chunk = min_rows * _LANES

    # Keep the block a multiple of the dtype's minimum sublane tile.
    tile_rows = max(min_rows, (int(tile_rows) // min_rows) * min_rows)

    # Pad only to the *minimum* tile (not the block size). When the input is
    # already aligned (common case), no extra HBM pass is introduced.
    flat = x.reshape(-1)
    n_pad = (-n) % min_chunk
    if n_pad:
        flat = jnp.pad(flat, (0, n_pad))
    rows = flat.size // _LANES
    slab = flat.reshape(rows, _LANES)

    # Small inputs collapse to a single full-slab block; large inputs stream
    # tile_rows x 128 blocks (edge block handled by Pallas OOB masking).
    block_rows = min(tile_rows, rows)
    grid = (pl.cdiv(rows, block_rows),)

    kernel = functools.partial(
        _smooth_step_kernel, lower=lower, upper=upper, a3=a3, a1=a1, a0=a0
    )

    out = pl.pallas_call(
        kernel,
        out_shape=jax.ShapeDtypeStruct((rows, _LANES), dtype),
        grid_spec=pltpu.PrefetchScalarGridSpec(
            num_scalar_prefetch=0,
            grid=grid,
            in_specs=[pl.BlockSpec((block_rows, _LANES), lambda i: (i, 0))],
            out_specs=pl.BlockSpec((block_rows, _LANES), lambda i: (i, 0)),
        ),
        compiler_params=pltpu.CompilerParams(
            dimension_semantics=("parallel",),
        ),
    )(slab)

    if n_pad:
        return out.reshape(-1)[:n].reshape(orig_shape)
    return out.reshape(orig_shape)


def smooth_step_ref(x, gamma=1.0):
    """Pure-JAX reference matching the PyTorch module."""
    lower = -gamma / 2.0
    upper = gamma / 2.0
    a3 = -2.0 / gamma ** 3
    a1 = 3.0 / (2.0 * gamma)
    a0 = 0.5
    poly = a3 * x ** 3 + a1 * x + a0
    return jnp.where(x <= lower, jnp.zeros_like(x),
                     jnp.where(x >= upper, jnp.ones_like(x), poly))


if __name__ == "__main__":
    key = jax.random.PRNGKey(0)
    # NCHW input like a typical adapter activation: batch=2, channels=4, 16x16
    x = jax.random.normal(key, (2, 4, 16, 16), dtype=jnp.float32)

    y = smooth_step(x, gamma=1.0)
    y = jax.block_until_ready(y)

    y_ref = smooth_step_ref(x, gamma=1.0)
    assert y.shape == x.shape and y.dtype == x.dtype
    assert jnp.allclose(y, y_ref, atol=1e-6, rtol=1e-6)

    # Also exercise a larger, non-aligned shape to cover padding + multi-block
    # streaming (grid > 1, edge block OOB-masked).
    x2 = jax.random.normal(jax.random.PRNGKey(1), (3, 7, 33, 65), dtype=jnp.float32)
    y2 = jax.block_until_ready(smooth_step(x2, gamma=0.5))
    assert jnp.allclose(y2, smooth_step_ref(x2, gamma=0.5), atol=1e-6, rtol=1e-6)

    print("KERNEL_OK")
</pallas_src>

<mosaic_0001>
module attributes {stable_mosaic.version = 11 : i64} {
  func.func @_smooth_step_kernel(%arg0: i32, %arg1: memref<16x128xf32, #tpu.memory_space<vmem>>, %arg2: memref<16x128xf32, #tpu.memory_space<vmem>>) attributes {dimension_semantics = [#tpu.dimension_semantics<parallel>], iteration_bounds = array<i64: 1>, scalar_prefetch = 0 : i64, scratch_operands = 0 : i64, tpu.core_type = #tpu.core_type<tc>, window_params = [{transform_indices = @transform_0, window_bounds = array<i64: 16, 128>}, {transform_indices = @transform_1, window_bounds = array<i64: 16, 128>}]} {
    %c0 = arith.constant 0 : index
    %c0_0 = arith.constant 0 : index
    %0 = vector.load %arg1[%c0, %c0_0] : memref<16x128xf32, #tpu.memory_space<vmem>>, vector<16x128xf32>
    %cst = arith.constant -2.000000e+00 : f32
    %1 = vector.broadcast %cst : f32 to vector<16x128xf32>
    %2 = arith.mulf %1, %0 : vector<16x128xf32>
    %3 = arith.mulf %2, %0 : vector<16x128xf32>
    %cst_1 = arith.constant 1.500000e+00 : f32
    %4 = vector.broadcast %cst_1 : f32 to vector<16x128xf32>
    %5 = arith.addf %3, %4 : vector<16x128xf32>
    %6 = arith.mulf %5, %0 : vector<16x128xf32>
    %cst_2 = arith.constant 5.000000e-01 : f32
    %7 = vector.broadcast %cst_2 : f32 to vector<16x128xf32>
    %8 = arith.addf %6, %7 : vector<16x128xf32>
    %cst_3 = arith.constant -5.000000e-01 : f32
    %9 = vector.broadcast %cst_3 : f32 to vector<16x128xf32>
    %10 = arith.cmpf ole, %0, %9 : vector<16x128xf32>
    %cst_4 = arith.constant 0.000000e+00 : f32
    %11 = vector.broadcast %cst_4 : f32 to vector<16x128xf32>
    %cst_5 = arith.constant 5.000000e-01 : f32
    %12 = vector.broadcast %cst_5 : f32 to vector<16x128xf32>
    %13 = arith.cmpf oge, %0, %12 : vector<16x128xf32>
    %cst_6 = arith.constant 1.000000e+00 : f32
    %14 = vector.broadcast %cst_6 : f32 to vector<16x128xf32>
    %15 = arith.select %13, %14, %8 : vector<16x128xi1>, vector<16x128xf32>
    %16 = arith.select %10, %11, %15 : vector<16x128xi1>, vector<16x128xf32>
    %c0_7 = arith.constant 0 : index
    %c0_8 = arith.constant 0 : index
    %17 = vector.load %arg2[%c0_7, %c0_8] : memref<16x128xf32, #tpu.memory_space<vmem>>, vector<16x128xf32>
    tpu.vector_store %arg2[%c0_7, %c0_8], %16 {strides = array<i32>} : memref<16x128xf32, #tpu.memory_space<vmem>>, vector<16x128xf32>,
    return
  }
  func.func @transform_0(%arg0: i32) -> (i32, i32) {
    %c0_i32 = arith.constant 0 : i32
    %c0_i32_0 = arith.constant 0 : i32
    return %arg0, %c0_i32 : i32, i32
  }
  func.func @transform_1(%arg0: i32) -> (i32, i32) {
    %c0_i32 = arith.constant 0 : i32
    %c0_i32_0 = arith.constant 0 : i32
    return %arg0, %c0_i32 : i32, i32
  }
}

</mosaic_0001>

<llo_original>
// kernel: tpu_custom_call.1
$region0: #{tpu_custom_call.1}
  #allocation0 [shape = 'u32[]', space=smem, size = 0x4, offset = 0x4, fixed_abs, tag = 'smem constant byte address 0x4 - core index']
  #allocation1 [shape = 'u32[144,128]{1,0:T(1,128)}', space=vmem, size = 0x12000, scoped, tag = 'internal scratch']
  %s0 = inlined_call_operand.hbm [shape: f32[16,128], index: 0, kind: input, shape index: {}]
  %s1 = inlined_call_operand.hbm [shape: f32[16,128], index: 1, kind: output, shape index: {}]
  %s2 = sld [smem:[#allocation0]]
  $region18: #{tpu_custom_call.1} parent=0
    _
  %s4 = ssub.s32 1, %s2
  %s5 = scalar_select 0, %s4, %s2
  $region1: #{tpu_custom_call.1} parent=0
    #allocation2 [shape = 'u8[8192]{0}', space=vmem, size = 0x2000, scoped, tag = 'input window, operand 0, single buffered']
    #allocation3 [shape = 's32[1]{0}', space=sflag, size = 0x4, scoped, tag = 'scoped memory for tpu_custom_call.1']
    #allocation4 [shape = 's32[1]{0}', space=sflag, size = 0x4, scoped, tag = 'scoped memory for tpu_custom_call.1']
    #allocation5 [shape = 'u8[8192]{0}', space=vmem, size = 0x2000, scoped, tag = 'output window, operand 0, single buffered']
    %6 = vsyncpa [#allocation3], 0
    %7 = vsyncpa [#allocation4], 0
    // Predicated region
    $region2: #{tpu_custom_call.1} parent=1 // pred_check
      _
    $region3: #{tpu_custom_call.1} parent=1 // pred_check_branch
      %9 = sbr.rel (0) target = $region5
    $region4: #{tpu_custom_call.1} parent=1 // pred_region
      %s11 = ssub.s32 256, 256
      %12 = vsyncadd [#allocation3], %s11
      %s13 = sshll.u32 [#allocation2], 4
      %s14 = int_to_ptr.vmem [resolvable:$true] %s13
      %19 = dma.hbm_to_vmem [thread:$0]  %s0, 256, %s14, [#allocation3], 128, 128, 8
    $region5: #{tpu_custom_call.1} parent=1 // pred_fallthru
      _
    // Predicated region
    $region6: #{tpu_custom_call.1} parent=1 // pred_check
      _
    $region7: #{tpu_custom_call.1} parent=1 // pred_check_branch
      %21 = sbr.rel (0) target = $region9
    $region8: #{tpu_custom_call.1} parent=1 // pred_region
      %22 = dma.done [#allocation3], 256
    $region9: #{tpu_custom_call.1} parent=1 // pred_fallthru
      _
    %v23 = vld [vmem:[#allocation2] sm:$0xff]
    %v24 = vld [vmem:[#allocation2 + $0x8] sm:$0xff]
    %v25 = vmul.f32 %v23, -2.0
    %v26 = vmul.f32 %v24, -2.0
    %v27 = vmul.f32 %v25, %v23
    %v28 = vmul.f32 %v26, %v24
    %v29 = vadd.f32 %v27, 1.5
    %v30 = vadd.f32 %v28, 1.5
    %v31 = vmul.f32 %v29, %v23
    %v32 = vmul.f32 %v30, %v24
    %v33 = vadd.f32 %v31, 0.5
    %v34 = vadd.f32 %v32, 0.5
    %vm35 = vcmp.le.f32.partialorder %v23, -0.5
    %vm36 = vcmp.le.f32.partialorder %v24, -0.5
    %vm37 = vcmp.ge.f32.partialorder %v23, 0.5
    %vm38 = vcmp.ge.f32.partialorder %v24, 0.5
    %v39 = vsel %vm37, 1.0, %v33
    %v40 = vsel %vm38, 1.0, %v34
    %v41 = vsel %vm35, 0.0, %v39
    %v42 = vsel %vm36, 0.0, %v40
    %43 = vst [vmem:[#allocation5] sm:$0xff] %v41
    %44 = vst [vmem:[#allocation5 + $0x8] sm:$0xff] %v42
    // Predicated region
    $region10: #{tpu_custom_call.1} parent=1 // pred_check
      _
    $region11: #{tpu_custom_call.1} parent=1 // pred_check_branch
      %46 = sbr.rel (0) target = $region13
    $region12: #{tpu_custom_call.1} parent=1 // pred_region
      %s48 = ssub.s32 256, 256
      %49 = vsyncadd [#allocation4], %s48
      %s50 = sshll.u32 [#allocation5], 4
      %s51 = int_to_ptr.vmem [resolvable:$true] %s50
      %56 = dma.vmem_to_hbm [thread:$0]  %s51, 256, %s1, [#allocation4], 128, 128, 8
    $region13: #{tpu_custom_call.1} parent=1 // pred_fallthru
      _
    // Predicated region
    $region14: #{tpu_custom_call.1} parent=1 // pred_check
      _
    $region15: #{tpu_custom_call.1} parent=1 // pred_check_branch
      %58 = sbr.rel (0) target = $region17
    $region16: #{tpu_custom_call.1} parent=1 // pred_region
      %59 = dma.done [#allocation4], 256
    $region17: #{tpu_custom_call.1} parent=1 // pred_fallthru
      _
    %60 = vsyncpa [#allocation3], 1
    %61 = vsyncpa [#allocation4], 1

</llo_original>
